<compile_context>
chip_gen: v7x
topology: tpu7x:2x2x1
jax: 0.10.0
libtpu: 0.0.40
codegen_flags: <defaults>
</compile_context>

<pallas_src>
import jax
import jax.numpy as jnp
from jax.experimental import pallas as pl
from jax.experimental.pallas import tpu as pltpu

_BN_EPS = 1e-5


# ---------------------------------------------------------------------------
# Fused two-tower Pallas kernel (no grid, everything resident in VMEM)
# ---------------------------------------------------------------------------
def _tower_chain(x, layer_refs):
    """Emit one MLP tower (Linear->Sigmoid->BN ... BN->Linear) on VMEM-resident data."""
    n = len(layer_refs)
    for i, (w_ref, b_ref) in enumerate(layer_refs):
        w = w_ref[...]
        b = b_ref[...]
        if i == n - 1:
            # Final layer: BatchNorm1d(affine=False, training) -> Linear
            m = jnp.mean(x, axis=0, keepdims=True)
            v = jnp.mean((x - m) ** 2, axis=0, keepdims=True)   # biased, two-pass
            xb = (x - m) * jax.lax.rsqrt(v + _BN_EPS)
            x = jnp.dot(xb, w, preferred_element_type=jnp.float32) + b
        else:
            # Hidden layer: Linear -> Sigmoid -> BatchNorm1d(affine=False, training)
            h = jax.nn.sigmoid(
                jnp.dot(x, w, preferred_element_type=jnp.float32) + b
            )
            m = jnp.mean(h, axis=0, keepdims=True)
            v = jnp.mean((h - m) ** 2, axis=0, keepdims=True)   # biased, two-pass
            x = (h - m) * jax.lax.rsqrt(v + _BN_EPS)
    return x


def _make_deepcca_kernel(n_layers1, n_layers2):
    """Kernel processing BOTH towers fully unrolled in one straight-line body."""

    def kernel(*refs):
        # refs = (x1, x2, w1_0, b1_0, ..., w2_0, b2_0, ..., out1, out2)
        it = iter(refs)
        x1_ref = next(it)
        x2_ref = next(it)
        tower1 = [(next(it), next(it)) for _ in range(n_layers1)]
        tower2 = [(next(it), next(it)) for _ in range(n_layers2)]
        o1_ref = next(it)
        o2_ref = next(it)
        # Both towers live in one basic block: the VLIW scheduler freely interleaves
        # their MXU / EUP / XLU work; intermediate activations never leave VMEM/vregs.
        o1_ref[...] = _tower_chain(x1_ref[...], tower1)
        o2_ref[...] = _tower_chain(x2_ref[...], tower2)

    return kernel


@jax.jit
def deep_cca_forward(x1, x2, params1, params2):
    """One jitted XLA program containing exactly one (gridless) Pallas launch."""
    batch = x1.shape[0]
    out_dim1 = params1[-1][0].shape[1]
    out_dim2 = params2[-1][0].shape[1]

    flat_inputs = [x1, x2]
    for w, b in params1:
        flat_inputs += [w, b]
    for w, b in params2:
        flat_inputs += [w, b]

    kernel = _make_deepcca_kernel(len(params1), len(params2))
    vmem_spec = pl.BlockSpec(memory_space=pltpu.MemorySpace.VMEM)

    out1, out2 = pl.pallas_call(
        kernel,
        out_shape=(
            jax.ShapeDtypeStruct((batch, out_dim1), jnp.float32),
            jax.ShapeDtypeStruct((batch, out_dim2), jnp.float32),
        ),
        in_specs=[vmem_spec] * len(flat_inputs),
        out_specs=(vmem_spec, vmem_spec),
    )(*flat_inputs)
    return out1, out2


# ---------------------------------------------------------------------------
# Parameter init (PyTorch nn.Linear style), kept at true (unpadded) shapes
# ---------------------------------------------------------------------------
def init_mlp_params(key, layer_sizes, input_size):
    """PyTorch-style Linear init: U(-1/sqrt(fan_in), 1/sqrt(fan_in)).

    W stored as [fan_in, fan_out] (so forward is x @ W + b); b stored as [1, fan_out]
    so it lives as a clean 2-D VMEM ref inside the kernel.
    """
    sizes = [input_size] + list(layer_sizes)
    params = []
    for l_id in range(len(sizes) - 1):
        fan_in, fan_out = sizes[l_id], sizes[l_id + 1]
        key, kw, kb = jax.random.split(key, 3)
        bound = 1.0 / jnp.sqrt(jnp.float32(fan_in))
        w = jax.random.uniform(kw, (fan_in, fan_out), jnp.float32, -bound, bound)
        b = jax.random.uniform(kb, (1, fan_out), jnp.float32, -bound, bound)
        params.append((w, b))
    return params


# ---------------------------------------------------------------------------
# Pure-JAX reference (for correctness check)
# ---------------------------------------------------------------------------
def _mlp_forward_ref(x, params):
    n = len(params)
    for i, (w, b) in enumerate(params):
        if i == n - 1:
            m = jnp.mean(x, axis=0, keepdims=True)
            v = jnp.mean((x - m) ** 2, axis=0, keepdims=True)
            x = (x - m) / jnp.sqrt(v + _BN_EPS)
            x = x @ w + b
        else:
            h = jax.nn.sigmoid(x @ w + b)
            m = jnp.mean(h, axis=0, keepdims=True)
            v = jnp.mean((h - m) ** 2, axis=0, keepdims=True)
            x = (h - m) / jnp.sqrt(v + _BN_EPS)
    return x


if __name__ == "__main__":
    key = jax.random.PRNGKey(0)
    k_x1, k_x2, k_p1, k_p2 = jax.random.split(key, 4)

    batch = 8
    input_size1, input_size2 = 32, 24
    layer_sizes1 = [32, 16]  # outdim_size = 16
    layer_sizes2 = [32, 16]

    x1 = jax.random.normal(k_x1, (batch, input_size1), jnp.float32)
    x2 = jax.random.normal(k_x2, (batch, input_size2), jnp.float32)

    params1 = init_mlp_params(k_p1, layer_sizes1, input_size1)
    params2 = init_mlp_params(k_p2, layer_sizes2, input_size2)

    out1, out2 = deep_cca_forward(x1, x2, params1, params2)
    jax.block_until_ready((out1, out2))

    ref1 = _mlp_forward_ref(x1, params1)
    ref2 = _mlp_forward_ref(x2, params2)

    assert out1.shape == (batch, layer_sizes1[-1])
    assert out2.shape == (batch, layer_sizes2[-1])
    assert jnp.allclose(out1, ref1, atol=1e-4, rtol=1e-4)
    assert jnp.allclose(out2, ref2, atol=1e-4, rtol=1e-4)

    print("KERNEL_OK")
</pallas_src>

<mosaic_0001>
module attributes {stable_mosaic.version = 11 : i64} {
  func.func @kernel(%arg0: memref<8x32xf32, #tpu.memory_space<vmem>>, %arg1: memref<8x24xf32, #tpu.memory_space<vmem>>, %arg2: memref<32x32xf32, #tpu.memory_space<vmem>>, %arg3: memref<1x32xf32, #tpu.memory_space<vmem>>, %arg4: memref<32x16xf32, #tpu.memory_space<vmem>>, %arg5: memref<1x16xf32, #tpu.memory_space<vmem>>, %arg6: memref<24x32xf32, #tpu.memory_space<vmem>>, %arg7: memref<1x32xf32, #tpu.memory_space<vmem>>, %arg8: memref<32x16xf32, #tpu.memory_space<vmem>>, %arg9: memref<1x16xf32, #tpu.memory_space<vmem>>, %arg10: memref<8x16xf32, #tpu.memory_space<vmem>>, %arg11: memref<8x16xf32, #tpu.memory_space<vmem>>) attributes {dimension_semantics = [], scalar_prefetch = 0 : i64, scratch_operands = 0 : i64, tpu.core_type = #tpu.core_type<tc>} {
    %c0 = arith.constant 0 : index
    %c0_0 = arith.constant 0 : index
    %0 = vector.load %arg0[%c0, %c0_0] : memref<8x32xf32, #tpu.memory_space<vmem>>, vector<8x32xf32>
    %c0_1 = arith.constant 0 : index
    %c0_2 = arith.constant 0 : index
    %1 = vector.load %arg2[%c0_1, %c0_2] : memref<32x32xf32, #tpu.memory_space<vmem>>, vector<32x32xf32>
    %c0_3 = arith.constant 0 : index
    %c0_4 = arith.constant 0 : index
    %2 = vector.load %arg3[%c0_3, %c0_4] : memref<1x32xf32, #tpu.memory_space<vmem>>, vector<1x32xf32>
    %cst = arith.constant dense<0.000000e+00> : vector<8x32xf32>
    %3 = tpu.matmul %0, %1, %cst {dimension_numbers = #tpu.dot_dimension_numbers<[1], [0], [0], [1], [0, 0, 1, 1], [], []>} : vector<8x32xf32>, vector<32x32xf32>, vector<8x32xf32> -> vector<8x32xf32>
    %4 = vector.broadcast %2 : vector<1x32xf32> to vector<8x32xf32>
    %5 = arith.addf %3, %4 : vector<8x32xf32>
    %6 = arith.negf %5 : vector<8x32xf32>
    %7 = math.exp %6 : vector<8x32xf32>
    %cst_5 = arith.constant 1.000000e+00 : f32
    %8 = vector.broadcast %cst_5 : f32 to vector<8x32xf32>
    %9 = arith.addf %8, %7 : vector<8x32xf32>
    %10 = arith.divf %8, %9 : vector<8x32xf32>
    %cst_6 = arith.constant dense<0.000000e+00> : vector<32xf32>
    %11 = vector.multi_reduction <add>, %10, %cst_6 [0] : vector<8x32xf32> to vector<32xf32>
    %12 = vector.shape_cast %11 : vector<32xf32> to vector<1x32xf32>
    %cst_7 = arith.constant 8.000000e+00 : f32
    %13 = vector.broadcast %cst_7 : f32 to vector<1x32xf32>
    %14 = arith.divf %12, %13 : vector<1x32xf32>
    %15 = vector.broadcast %14 : vector<1x32xf32> to vector<8x32xf32>
    %16 = arith.subf %10, %15 : vector<8x32xf32>
    %17 = arith.mulf %16, %16 : vector<8x32xf32>
    %cst_8 = arith.constant dense<0.000000e+00> : vector<32xf32>
    %18 = vector.multi_reduction <add>, %17, %cst_8 [0] : vector<8x32xf32> to vector<32xf32>
    %19 = vector.shape_cast %18 : vector<32xf32> to vector<1x32xf32>
    %cst_9 = arith.constant 8.000000e+00 : f32
    %20 = vector.broadcast %cst_9 : f32 to vector<1x32xf32>
    %21 = arith.divf %19, %20 : vector<1x32xf32>
    %22 = vector.broadcast %14 : vector<1x32xf32> to vector<8x32xf32>
    %23 = arith.subf %10, %22 : vector<8x32xf32>
    %cst_10 = arith.constant 9.99999974E-6 : f32
    %24 = vector.broadcast %cst_10 : f32 to vector<1x32xf32>
    %25 = arith.addf %21, %24 : vector<1x32xf32>
    %26 = math.rsqrt %25 : vector<1x32xf32>
    %27 = vector.broadcast %26 : vector<1x32xf32> to vector<8x32xf32>
    %28 = arith.mulf %23, %27 : vector<8x32xf32>
    %c0_11 = arith.constant 0 : index
    %c0_12 = arith.constant 0 : index
    %29 = vector.load %arg4[%c0_11, %c0_12] : memref<32x16xf32, #tpu.memory_space<vmem>>, vector<32x16xf32>
    %c0_13 = arith.constant 0 : index
    %c0_14 = arith.constant 0 : index
    %30 = vector.load %arg5[%c0_13, %c0_14] : memref<1x16xf32, #tpu.memory_space<vmem>>, vector<1x16xf32>
    %cst_15 = arith.constant dense<0.000000e+00> : vector<32xf32>
    %31 = vector.multi_reduction <add>, %28, %cst_15 [0] : vector<8x32xf32> to vector<32xf32>
    %32 = vector.shape_cast %31 : vector<32xf32> to vector<1x32xf32>
    %cst_16 = arith.constant 8.000000e+00 : f32
    %33 = vector.broadcast %cst_16 : f32 to vector<1x32xf32>
    %34 = arith.divf %32, %33 : vector<1x32xf32>
    %35 = vector.broadcast %34 : vector<1x32xf32> to vector<8x32xf32>
    %36 = arith.subf %28, %35 : vector<8x32xf32>
    %37 = arith.mulf %36, %36 : vector<8x32xf32>
    %cst_17 = arith.constant dense<0.000000e+00> : vector<32xf32>
    %38 = vector.multi_reduction <add>, %37, %cst_17 [0] : vector<8x32xf32> to vector<32xf32>
    %39 = vector.shape_cast %38 : vector<32xf32> to vector<1x32xf32>
    %cst_18 = arith.constant 8.000000e+00 : f32
    %40 = vector.broadcast %cst_18 : f32 to vector<1x32xf32>
    %41 = arith.divf %39, %40 : vector<1x32xf32>
    %42 = vector.broadcast %34 : vector<1x32xf32> to vector<8x32xf32>
    %43 = arith.subf %28, %42 : vector<8x32xf32>
    %cst_19 = arith.constant 9.99999974E-6 : f32
    %44 = vector.broadcast %cst_19 : f32 to vector<1x32xf32>
    %45 = arith.addf %41, %44 : vector<1x32xf32>
    %46 = math.rsqrt %45 : vector<1x32xf32>
    %47 = vector.broadcast %46 : vector<1x32xf32> to vector<8x32xf32>
    %48 = arith.mulf %43, %47 : vector<8x32xf32>
    %cst_20 = arith.constant dense<0.000000e+00> : vector<8x16xf32>
    %49 = tpu.matmul %48, %29, %cst_20 {dimension_numbers = #tpu.dot_dimension_numbers<[1], [0], [0], [1], [0, 0, 1, 1], [], []>} : vector<8x32xf32>, vector<32x16xf32>, vector<8x16xf32> -> vector<8x16xf32>
    %50 = vector.broadcast %30 : vector<1x16xf32> to vector<8x16xf32>
    %51 = arith.addf %49, %50 : vector<8x16xf32>
    %c0_21 = arith.constant 0 : index
    %c0_22 = arith.constant 0 : index
    %52 = vector.load %arg10[%c0_21, %c0_22] : memref<8x16xf32, #tpu.memory_space<vmem>>, vector<8x16xf32>
    tpu.vector_store %arg10[%c0_21, %c0_22], %51 {strides = array<i32>} : memref<8x16xf32, #tpu.memory_space<vmem>>, vector<8x16xf32>,
    %c0_23 = arith.constant 0 : index
    %c0_24 = arith.constant 0 : index
    %53 = vector.load %arg1[%c0_23, %c0_24] : memref<8x24xf32, #tpu.memory_space<vmem>>, vector<8x24xf32>
    %c0_25 = arith.constant 0 : index
    %c0_26 = arith.constant 0 : index
    %54 = vector.load %arg6[%c0_25, %c0_26] : memref<24x32xf32, #tpu.memory_space<vmem>>, vector<24x32xf32>
    %c0_27 = arith.constant 0 : index
    %c0_28 = arith.constant 0 : index
    %55 = vector.load %arg7[%c0_27, %c0_28] : memref<1x32xf32, #tpu.memory_space<vmem>>, vector<1x32xf32>
    %cst_29 = arith.constant dense<0.000000e+00> : vector<8x32xf32>
    %56 = tpu.matmul %53, %54, %cst_29 {dimension_numbers = #tpu.dot_dimension_numbers<[1], [0], [0], [1], [0, 0, 1, 1], [], []>} : vector<8x24xf32>, vector<24x32xf32>, vector<8x32xf32> -> vector<8x32xf32>
    %57 = vector.broadcast %55 : vector<1x32xf32> to vector<8x32xf32>
    %58 = arith.addf %56, %57 : vector<8x32xf32>
    %59 = arith.negf %58 : vector<8x32xf32>
    %60 = math.exp %59 : vector<8x32xf32>
    %cst_30 = arith.constant 1.000000e+00 : f32
    %61 = vector.broadcast %cst_30 : f32 to vector<8x32xf32>
    %62 = arith.addf %61, %60 : vector<8x32xf32>
    %63 = arith.divf %61, %62 : vector<8x32xf32>
    %cst_31 = arith.constant dense<0.000000e+00> : vector<32xf32>
    %64 = vector.multi_reduction <add>, %63, %cst_31 [0] : vector<8x32xf32> to vector<32xf32>
    %65 = vector.shape_cast %64 : vector<32xf32> to vector<1x32xf32>
    %cst_32 = arith.constant 8.000000e+00 : f32
    %66 = vector.broadcast %cst_32 : f32 to vector<1x32xf32>
    %67 = arith.divf %65, %66 : vector<1x32xf32>
    %68 = vector.broadcast %67 : vector<1x32xf32> to vector<8x32xf32>
    %69 = arith.subf %63, %68 : vector<8x32xf32>
    %70 = arith.mulf %69, %69 : vector<8x32xf32>
    %cst_33 = arith.constant dense<0.000000e+00> : vector<32xf32>
    %71 = vector.multi_reduction <add>, %70, %cst_33 [0] : vector<8x32xf32> to vector<32xf32>
    %72 = vector.shape_cast %71 : vector<32xf32> to vector<1x32xf32>
    %cst_34 = arith.constant 8.000000e+00 : f32
    %73 = vector.broadcast %cst_34 : f32 to vector<1x32xf32>
    %74 = arith.divf %72, %73 : vector<1x32xf32>
    %75 = vector.broadcast %67 : vector<1x32xf32> to vector<8x32xf32>
    %76 = arith.subf %63, %75 : vector<8x32xf32>
    %cst_35 = arith.constant 9.99999974E-6 : f32
    %77 = vector.broadcast %cst_35 : f32 to vector<1x32xf32>
    %78 = arith.addf %74, %77 : vector<1x32xf32>
    %79 = math.rsqrt %78 : vector<1x32xf32>
    %80 = vector.broadcast %79 : vector<1x32xf32> to vector<8x32xf32>
    %81 = arith.mulf %76, %80 : vector<8x32xf32>
    %c0_36 = arith.constant 0 : index
    %c0_37 = arith.constant 0 : index
    %82 = vector.load %arg8[%c0_36, %c0_37] : memref<32x16xf32, #tpu.memory_space<vmem>>, vector<32x16xf32>
    %c0_38 = arith.constant 0 : index
    %c0_39 = arith.constant 0 : index
    %83 = vector.load %arg9[%c0_38, %c0_39] : memref<1x16xf32, #tpu.memory_space<vmem>>, vector<1x16xf32>
    %cst_40 = arith.constant dense<0.000000e+00> : vector<32xf32>
    %84 = vector.multi_reduction <add>, %81, %cst_40 [0] : vector<8x32xf32> to vector<32xf32>
    %85 = vector.shape_cast %84 : vector<32xf32> to vector<1x32xf32>
    %cst_41 = arith.constant 8.000000e+00 : f32
    %86 = vector.broadcast %cst_41 : f32 to vector<1x32xf32>
    %87 = arith.divf %85, %86 : vector<1x32xf32>
    %88 = vector.broadcast %87 : vector<1x32xf32> to vector<8x32xf32>
    %89 = arith.subf %81, %88 : vector<8x32xf32>
    %90 = arith.mulf %89, %89 : vector<8x32xf32>
    %cst_42 = arith.constant dense<0.000000e+00> : vector<32xf32>
    %91 = vector.multi_reduction <add>, %90, %cst_42 [0] : vector<8x32xf32> to vector<32xf32>
    %92 = vector.shape_cast %91 : vector<32xf32> to vector<1x32xf32>
    %cst_43 = arith.constant 8.000000e+00 : f32
    %93 = vector.broadcast %cst_43 : f32 to vector<1x32xf32>
    %94 = arith.divf %92, %93 : vector<1x32xf32>
    %95 = vector.broadcast %87 : vector<1x32xf32> to vector<8x32xf32>
    %96 = arith.subf %81, %95 : vector<8x32xf32>
    %cst_44 = arith.constant 9.99999974E-6 : f32
    %97 = vector.broadcast %cst_44 : f32 to vector<1x32xf32>
    %98 = arith.addf %94, %97 : vector<1x32xf32>
    %99 = math.rsqrt %98 : vector<1x32xf32>
    %100 = vector.broadcast %99 : vector<1x32xf32> to vector<8x32xf32>
    %101 = arith.mulf %96, %100 : vector<8x32xf32>
    %cst_45 = arith.constant dense<0.000000e+00> : vector<8x16xf32>
    %102 = tpu.matmul %101, %82, %cst_45 {dimension_numbers = #tpu.dot_dimension_numbers<[1], [0], [0], [1], [0, 0, 1, 1], [], []>} : vector<8x32xf32>, vector<32x16xf32>, vector<8x16xf32> -> vector<8x16xf32>
    %103 = vector.broadcast %83 : vector<1x16xf32> to vector<8x16xf32>
    %104 = arith.addf %102, %103 : vector<8x16xf32>
    %c0_46 = arith.constant 0 : index
    %c0_47 = arith.constant 0 : index
    %105 = vector.load %arg11[%c0_46, %c0_47] : memref<8x16xf32, #tpu.memory_space<vmem>>, vector<8x16xf32>
    tpu.vector_store %arg11[%c0_46, %c0_47], %104 {strides = array<i32>} : memref<8x16xf32, #tpu.memory_space<vmem>>, vector<8x16xf32>,
    return
  }
}

</mosaic_0001>

<llo_original>
// kernel: deep_cca_forward.1
$region0: #{deep_cca_forward.1}
  #allocation0 [shape = 'u32[]', space=smem, size = 0x4, offset = 0x4, fixed_abs, tag = 'smem constant byte address 0x4 - core index']
  #allocation1 [shape = 'u32[144,128]{1,0:T(1,128)}', space=vmem, size = 0x12000, scoped, tag = 'internal scratch']
  %s0 = inlined_call_operand.vmem [shape: f32[8,32], index: 0, kind: input, shape index: {}]
  %s1 = inlined_call_operand.vmem [shape: f32[8,24], index: 1, kind: input, shape index: {}]
  %s2 = inlined_call_operand.vmem [shape: f32[32,32], index: 2, kind: input, shape index: {}]
  %s3 = inlined_call_operand.vmem [shape: f32[1,32], index: 3, kind: input, shape index: {}]
  %s4 = inlined_call_operand.vmem [shape: f32[32,16], index: 4, kind: input, shape index: {}]
  %s5 = inlined_call_operand.vmem [shape: f32[1,16], index: 5, kind: input, shape index: {}]
  %s6 = inlined_call_operand.vmem [shape: f32[24,32], index: 6, kind: input, shape index: {}]
  %s7 = inlined_call_operand.vmem [shape: f32[1,32], index: 7, kind: input, shape index: {}]
  %s8 = inlined_call_operand.vmem [shape: f32[32,16], index: 8, kind: input, shape index: {}]
  %s9 = inlined_call_operand.vmem [shape: f32[1,16], index: 9, kind: input, shape index: {}]
  %s10 = inlined_call_operand.hbm [shape: f32[8,16], index: 10, kind: output, shape index: {0}]
  %s11 = inlined_call_operand.hbm [shape: f32[8,16], index: 11, kind: output, shape index: {1}]
  %12 = xla_tuple %s10, %s11
  %s13 = sld [smem:[#allocation0]]
  $region58: #{deep_cca_forward.1} parent=0
    _
  %s15 = ssub.s32 1, %s13
  %s16 = scalar_select 0, %s15, %s13
  $region1: #{deep_cca_forward.1} parent=0
    #allocation2 [shape = 'u8[4096]{0}', space=vmem, size = 0x1000, scoped, tag = 'output window, operand 0, single buffered']
    #allocation3 [shape = 's32[1]{0}', space=sflag, size = 0x4, scoped, tag = 'scoped memory for deep_cca_forward.1']
    #allocation4 [shape = 'u8[4096]{0}', space=vmem, size = 0x1000, scoped, tag = 'output window, operand 1, single buffered']
    #allocation5 [shape = 's32[1]{0}', space=sflag, size = 0x4, scoped, tag = 'scoped memory for deep_cca_forward.1']
    %17 = vsyncpa [#allocation3], 0
    %18 = vsyncpa [#allocation5], 0
    // Predicated region
    $region2: #{deep_cca_forward.1} parent=1 // pred_check
      _
    $region3: #{deep_cca_forward.1} parent=1 // pred_check_branch
      %20 = sbr.rel (0) target = $region5
    $region4: #{deep_cca_forward.1} parent=1 // pred_region
      _
    $region5: #{deep_cca_forward.1} parent=1 // pred_fallthru
      _
    // Predicated region
    $region6: #{deep_cca_forward.1} parent=1 // pred_check
      _
    $region7: #{deep_cca_forward.1} parent=1 // pred_check_branch
      %22 = sbr.rel (0) target = $region9
    $region8: #{deep_cca_forward.1} parent=1 // pred_region
      _
    $region9: #{deep_cca_forward.1} parent=1 // pred_fallthru
      _
    // Predicated region
    $region10: #{deep_cca_forward.1} parent=1 // pred_check
      _
    $region11: #{deep_cca_forward.1} parent=1 // pred_check_branch
      %24 = sbr.rel (0) target = $region13
    $region12: #{deep_cca_forward.1} parent=1 // pred_region
      _
    $region13: #{deep_cca_forward.1} parent=1 // pred_fallthru
      _
    // Predicated region
    $region14: #{deep_cca_forward.1} parent=1 // pred_check
      _
    $region15: #{deep_cca_forward.1} parent=1 // pred_check_branch
      %26 = sbr.rel (0) target = $region17
    $region16: #{deep_cca_forward.1} parent=1 // pred_region
      _
    $region17: #{deep_cca_forward.1} parent=1 // pred_fallthru
      _
    // Predicated region
    $region18: #{deep_cca_forward.1} parent=1 // pred_check
      _
    $region19: #{deep_cca_forward.1} parent=1 // pred_check_branch
      %28 = sbr.rel (0) target = $region21
    $region20: #{deep_cca_forward.1} parent=1 // pred_region
      _
    $region21: #{deep_cca_forward.1} parent=1 // pred_fallthru
      _
    // Predicated region
    $region22: #{deep_cca_forward.1} parent=1 // pred_check
      _
    $region23: #{deep_cca_forward.1} parent=1 // pred_check_branch
      %30 = sbr.rel (0) target = $region25
    $region24: #{deep_cca_forward.1} parent=1 // pred_region
      _
    $region25: #{deep_cca_forward.1} parent=1 // pred_fallthru
      _
    // Predicated region
    $region26: #{deep_cca_forward.1} parent=1 // pred_check
      _
    $region27: #{deep_cca_forward.1} parent=1 // pred_check_branch
      %32 = sbr.rel (0) target = $region29
    $region28: #{deep_cca_forward.1} parent=1 // pred_region
      _
    $region29: #{deep_cca_forward.1} parent=1 // pred_fallthru
      _
    // Predicated region
    $region30: #{deep_cca_forward.1} parent=1 // pred_check
      _
    $region31: #{deep_cca_forward.1} parent=1 // pred_check_branch
      %34 = sbr.rel (0) target = $region33
    $region32: #{deep_cca_forward.1} parent=1 // pred_region
      _
    $region33: #{deep_cca_forward.1} parent=1 // pred_fallthru
      _
    // Predicated region
    $region34: #{deep_cca_forward.1} parent=1 // pred_check
      _
    $region35: #{deep_cca_forward.1} parent=1 // pred_check_branch
      %36 = sbr.rel (0) target = $region37
    $region36: #{deep_cca_forward.1} parent=1 // pred_region
      _
    $region37: #{deep_cca_forward.1} parent=1 // pred_fallthru
      _
    // Predicated region
    $region38: #{deep_cca_forward.1} parent=1 // pred_check
      _
    $region39: #{deep_cca_forward.1} parent=1 // pred_check_branch
      %38 = sbr.rel (0) target = $region41
    $region40: #{deep_cca_forward.1} parent=1 // pred_region
      _
    $region41: #{deep_cca_forward.1} parent=1 // pred_fallthru
      _
    %v39 = vld [vmem:[%s0] sm:$0xff]
    %v40 = vld [vmem:[%s2] sm:$0xff]
    %v41 = vld [vmem:[%s2 + $0x8] sm:$0xff]
    %v42 = vld [vmem:[%s2 + $0x10] sm:$0xff]
    %v43 = vld [vmem:[%s2 + $0x18] sm:$0xff]
    %v44 = vld [vmem:[%s3] sm:$0x1]
    %v46 = vlaneseq
    %v47 = vshrl.u32 %v46, 7
    %v48 = vsub.s32 0, %v47
    %v49 = vrot.slane %v44, %v48
    %vm51 = vcmask 261120
    %v53 = vsel %vm51, %v39, 0
    %55 = vmatprep.subr.mxu0 0.0
    %56 = vmatpush1.msra.mxu0 %v40
    %57 = vmatprep.subr.mxu0 0.0
    %58 = vmatpush1.msra.mxu0 %v41
    %59 = vmatprep.subr.mxu0 0.0
    %60 = vmatpush1.msra.mxu0 %v42
    %61 = vmatprep.subr.mxu0 0.0
    %62 = vmatpush1.msra.mxu0 %v43
    %63 = vmatprep.subr.mxu0 0.0
    %64 = vmatpush1.msra.mxu0 0.0
    %65 = vmatprep.subr.mxu0 0.0
    %66 = vmatpush1.msra.mxu0 0.0
    %67 = vmatprep.subr.mxu0 0.0
    %68 = vmatpush1.msra.mxu0 0.0
    %69 = vmatprep.subr.mxu0 0.0
    %70 = vmatpush1.msra.mxu0 0.0
    %71 = vmatprep.subr.mxu0 0.0
    %72 = vmatpush1.msra.mxu0 0.0
    %73 = vmatprep.subr.mxu0 0.0
    %74 = vmatpush1.msra.mxu0 0.0
    %75 = vmatprep.subr.mxu0 0.0
    %76 = vmatpush1.msra.mxu0 0.0
    %77 = vmatprep.subr.mxu0 0.0
    %78 = vmatpush1.msra.mxu0 0.0
    %79 = vmatprep.subr.mxu0 0.0
    %80 = vmatpush1.msra.mxu0 0.0
    %81 = vmatprep.subr.mxu0 0.0
    %82 = vmatpush1.msra.mxu0 0.0
    %83 = vmatprep.subr.mxu0 0.0
    %84 = vmatpush1.msra.mxu0 0.0
    %85 = vmatprep.subr.mxu0 0.0
    %86 = vmatpush1.msra.mxu0 0.0
    %87 = vmatprep.subr.mxu0 0.0
    %88 = vmatpush1.msra.mxu0 0.0
    %89 = vmatprep.subr.mxu0 0.0
    %90 = vmatpush1.msra.mxu0 0.0
    %91 = vmatprep.subr.mxu0 0.0
    %92 = vmatpush1.msra.mxu0 0.0
    %93 = vmatprep.subr.mxu0 0.0
    %94 = vmatpush1.msra.mxu0 0.0
    %95 = vmatprep.subr.mxu0 0.0
    %96 = vmatpush1.msra.mxu0 0.0
    %97 = vmatprep.subr.mxu0 0.0
    %98 = vmatpush1.msra.mxu0 0.0
    %99 = vmatprep.subr.mxu0 0.0
    %100 = vmatpush1.msra.mxu0 0.0
    %101 = vmatprep.subr.mxu0 0.0
    %102 = vmatpush1.msra.mxu0 0.0
    %103 = vmatprep.subr.mxu0 0.0
    %104 = vmatpush1.msra.mxu0 0.0
    %105 = vmatprep.subr.mxu0 0.0
    %106 = vmatpush1.msra.mxu0 0.0
    %107 = vmatprep.subr.mxu0 0.0
    %108 = vmatpush1.msra.mxu0 0.0
    %109 = vmatprep.subr.mxu0 0.0
    %110 = vmatpush1.msra.mxu0 0.0
    %111 = vmatprep.subr.mxu0 0.0
    %112 = vmatpush1.msra.mxu0 0.0
    %113 = vmatprep.subr.mxu0 0.0
    %114 = vmatpush1.msra.mxu0 0.0
    %115 = vmatprep.subr.mxu0 0.0
    %116 = vmatpush1.msra.mxu0 0.0
    %117 = vmatprep.subr.mxu0 0.0
    %118 = vmatpush1.msra.mxu0 0.0
    %119 = vmatprep.mubr.f32.mxu0 0.0
    %120 = vmatmul.mubr.f32.gmra.mrb[0].mxu0 %v53
    %v121 = vpop.f32.mrb[0].mxu0
    %v122 = vadd.f32 %v49, %v121
    %v123 = vpop.f32.mrb[0].mxu0
    %124 = vdwg.mxu0
    %v125 = vxor.u32 %v122, 2147483648
    %v126 = vmul.f32 %v125, 1.442695
    %v127 = vpow.pop %v126
    %v128 = vadd.f32 %v127, 1.0
    %v129 = vrcp.pop %v128
    %v130 = vmul.f32 1.0, %v129
    %v131 = vsel %vm51, %v130, 0.0
    %v132 = vrot.slane %v131, 4
    %v133 = vadd.f32 %v131, %v132
    %v134 = vrot.slane %v133, 2
    %v135 = vadd.f32 %v133, %v134
    %v136 = vrot.slane %v135, 1
    %v137 = vadd.f32 %v135, %v136
    %v138 = vrcp.pop 8.0
    %v139 = vmul.f32 %v137, %v138
    %v140 = vsub.f32 %v130, %v139
    %v141 = vmul.f32 %v140, %v140
    %v142 = vsel %vm51, %v141, 0.0
    %v143 = vrot.slane %v142, 4
    %v144 = vadd.f32 %v142, %v143
    %v145 = vrot.slane %v144, 2
    %v146 = vadd.f32 %v144, %v145
    %v147 = vrot.slane %v146, 1
    %v148 = vadd.f32 %v146, %v147
    %v149 = vmul.f32 %v148, %v138
    %v150 = vadd.f32 %v149, 1e-05
    %v151 = vrsqrt.pop %v150
    %v152 = vmul.f32 %v140, %v151
    %v153 = vld [vmem:[%s4] sm:$0xff]
    %v154 = vld [vmem:[%s4 + $0x8] sm:$0xff]
    %v155 = vld [vmem:[%s4 + $0x10] sm:$0xff]
    %v156 = vld [vmem:[%s4 + $0x18] sm:$0xff]
    %v157 = vld [vmem:[%s5] sm:$0x1]
    %v158 = vsel %vm51, %v152, 0.0
    %v159 = vrot.slane %v158, 4
    %v160 = vadd.f32 %v158, %v159
    %v161 = vrot.slane %v160, 2
    %v162 = vadd.f32 %v160, %v161
    %v163 = vrot.slane %v162, 1
    %v164 = vadd.f32 %v162, %v163
    %v165 = vmul.f32 %v164, %v138
    %v166 = vsub.f32 %v152, %v165
    %v167 = vmul.f32 %v166, %v166
    %v168 = vsel %vm51, %v167, 0.0
    %v169 = vrot.slane %v168, 4
    %v170 = vadd.f32 %v168, %v169
    %v171 = vrot.slane %v170, 2
    %v172 = vadd.f32 %v170, %v171
    %v173 = vrot.slane %v172, 1
    %v174 = vadd.f32 %v172, %v173
    %v175 = vmul.f32 %v174, %v138
    %v176 = vadd.f32 %v175, 1e-05
    %v177 = vrsqrt.pop %v176
    %v178 = vmul.f32 %v166, %v177
    %v180 = vlaneseq
    %v181 = vshrl.u32 %v180, 7
    %v182 = vsub.s32 0, %v181
    %v183 = vrot.slane %v157, %v182
    %v186 = vsel %vm51, %v178, 0
    %188 = vmatprep.subr.mxu0 0.0
    %189 = vmatpush1.msra.mxu0 %v153
    %190 = vmatprep.subr.mxu0 0.0
    %191 = vmatpush1.msra.mxu0 %v154
    %192 = vmatprep.subr.mxu0 0.0
    %193 = vmatpush1.msra.mxu0 %v155
    %194 = vmatprep.subr.mxu0 0.0
    %195 = vmatpush1.msra.mxu0 %v156
    %196 = vmatprep.subr.mxu0 0.0
    %197 = vmatpush1.msra.mxu0 0.0
    %198 = vmatprep.subr.mxu0 0.0
    %199 = vmatpush1.msra.mxu0 0.0
    %200 = vmatprep.subr.mxu0 0.0
    %201 = vmatpush1.msra.mxu0 0.0
    %202 = vmatprep.subr.mxu0 0.0
    %203 = vmatpush1.msra.mxu0 0.0
    %204 = vmatprep.subr.mxu0 0.0
    %205 = vmatpush1.msra.mxu0 0.0
    %206 = vmatprep.subr.mxu0 0.0
    %207 = vmatpush1.msra.mxu0 0.0
    %208 = vmatprep.subr.mxu0 0.0
    %209 = vmatpush1.msra.mxu0 0.0
    %210 = vmatprep.subr.mxu0 0.0
    %211 = vmatpush1.msra.mxu0 0.0
    %212 = vmatprep.subr.mxu0 0.0
    %213 = vmatpush1.msra.mxu0 0.0
    %214 = vmatprep.subr.mxu0 0.0
    %215 = vmatpush1.msra.mxu0 0.0
    %216 = vmatprep.subr.mxu0 0.0
    %217 = vmatpush1.msra.mxu0 0.0
    %218 = vmatprep.subr.mxu0 0.0
    %219 = vmatpush1.msra.mxu0 0.0
    %220 = vmatprep.subr.mxu0 0.0
    %221 = vmatpush1.msra.mxu0 0.0
    %222 = vmatprep.subr.mxu0 0.0
    %223 = vmatpush1.msra.mxu0 0.0
    %224 = vmatprep.subr.mxu0 0.0
    %225 = vmatpush1.msra.mxu0 0.0
    %226 = vmatprep.subr.mxu0 0.0
    %227 = vmatpush1.msra.mxu0 0.0
    %228 = vmatprep.subr.mxu0 0.0
    %229 = vmatpush1.msra.mxu0 0.0
    %230 = vmatprep.subr.mxu0 0.0
    %231 = vmatpush1.msra.mxu0 0.0
    %232 = vmatprep.subr.mxu0 0.0
    %233 = vmatpush1.msra.mxu0 0.0
    %234 = vmatprep.subr.mxu0 0.0
    %235 = vmatpush1.msra.mxu0 0.0
    %236 = vmatprep.subr.mxu0 0.0
    %237 = vmatpush1.msra.mxu0 0.0
    %238 = vmatprep.subr.mxu0 0.0
    %239 = vmatpush1.msra.mxu0 0.0
    %240 = vmatprep.subr.mxu0 0.0
    %241 = vmatpush1.msra.mxu0 0.0
    %242 = vmatprep.subr.mxu0 0.0
    %243 = vmatpush1.msra.mxu0 0.0
    %244 = vmatprep.subr.mxu0 0.0
    %245 = vmatpush1.msra.mxu0 0.0
    %246 = vmatprep.subr.mxu0 0.0
    %247 = vmatpush1.msra.mxu0 0.0
    %248 = vmatprep.subr.mxu0 0.0
    %249 = vmatpush1.msra.mxu0 0.0
    %250 = vmatprep.subr.mxu0 0.0
    %251 = vmatpush1.msra.mxu0 0.0
    %252 = vmatprep.mubr.f32.mxu0 0.0
    %253 = vmatmul.mubr.f32.gmra.mrb[0].mxu0 %v186
    %v254 = vpop.f32.mrb[0].mxu0
    %v255 = vadd.f32 %v183, %v254
    %v256 = vpop.f32.mrb[0].mxu0
    %257 = vdwg.mxu0
    %vm258 = vcmask 130048
    %259 = vst.msk [vmem:[#allocation2] sm:$0xff] %vm258, %v255
    %v260 = vld [vmem:[%s1] sm:$0xff]
    %v261 = vld [vmem:[%s6] sm:$0xff]
    %v262 = vld [vmem:[%s6 + $0x8] sm:$0xff]
    %v263 = vld [vmem:[%s6 + $0x10] sm:$0xff]
    %v264 = vld [vmem:[%s7] sm:$0x1]
    %v266 = vlaneseq
    %v267 = vshrl.u32 %v266, 7
    %v268 = vsub.s32 0, %v267
    %v269 = vrot.slane %v264, %v268
    %vm271 = vcmask 195584
    %v273 = vsel %vm271, %v260, 0
    %275 = vmatprep.subr.mxu0 0.0
    %276 = vmatpush1.msra.mxu0 %v261
    %277 = vmatprep.subr.mxu0 0.0
    %278 = vmatpush1.msra.mxu0 %v262
    %279 = vmatprep.subr.mxu0 0.0
    %280 = vmatpush1.msra.mxu0 %v263
    %281 = vmatprep.subr.mxu0 0.0
    %282 = vmatpush1.msra.mxu0 0.0
    %283 = vmatprep.subr.mxu0 0.0
    %284 = vmatpush1.msra.mxu0 0.0
    %285 = vmatprep.subr.mxu0 0.0
    %286 = vmatpush1.msra.mxu0 0.0
    %287 = vmatprep.subr.mxu0 0.0
    %288 = vmatpush1.msra.mxu0 0.0
    %289 = vmatprep.subr.mxu0 0.0
    %290 = vmatpush1.msra.mxu0 0.0
    %291 = vmatprep.subr.mxu0 0.0
    %292 = vmatpush1.msra.mxu0 0.0
    %293 = vmatprep.subr.mxu0 0.0
    %294 = vmatpush1.msra.mxu0 0.0
    %295 = vmatprep.subr.mxu0 0.0
    %296 = vmatpush1.msra.mxu0 0.0
    %297 = vmatprep.subr.mxu0 0.0
    %298 = vmatpush1.msra.mxu0 0.0
    %299 = vmatprep.subr.mxu0 0.0
    %300 = vmatpush1.msra.mxu0 0.0
    %301 = vmatprep.subr.mxu0 0.0
    %302 = vmatpush1.msra.mxu0 0.0
    %303 = vmatprep.subr.mxu0 0.0
    %304 = vmatpush1.msra.mxu0 0.0
    %305 = vmatprep.subr.mxu0 0.0
    %306 = vmatpush1.msra.mxu0 0.0
    %307 = vmatprep.subr.mxu0 0.0
    %308 = vmatpush1.msra.mxu0 0.0
    %309 = vmatprep.subr.mxu0 0.0
    %310 = vmatpush1.msra.mxu0 0.0
    %311 = vmatprep.subr.mxu0 0.0
    %312 = vmatpush1.msra.mxu0 0.0
    %313 = vmatprep.subr.mxu0 0.0
    %314 = vmatpush1.msra.mxu0 0.0
    %315 = vmatprep.subr.mxu0 0.0
    %316 = vmatpush1.msra.mxu0 0.0
    %317 = vmatprep.subr.mxu0 0.0
    %318 = vmatpush1.msra.mxu0 0.0
    %319 = vmatprep.subr.mxu0 0.0
    %320 = vmatpush1.msra.mxu0 0.0
    %321 = vmatprep.subr.mxu0 0.0
    %322 = vmatpush1.msra.mxu0 0.0
    %323 = vmatprep.subr.mxu0 0.0
    %324 = vmatpush1.msra.mxu0 0.0
    %325 = vmatprep.subr.mxu0 0.0
    %326 = vmatpush1.msra.mxu0 0.0
    %327 = vmatprep.subr.mxu0 0.0
    %328 = vmatpush1.msra.mxu0 0.0
    %329 = vmatprep.subr.mxu0 0.0
    %330 = vmatpush1.msra.mxu0 0.0
    %331 = vmatprep.subr.mxu0 0.0
    %332 = vmatpush1.msra.mxu0 0.0
    %333 = vmatprep.subr.mxu0 0.0
    %334 = vmatpush1.msra.mxu0 0.0
    %335 = vmatprep.subr.mxu0 0.0
    %336 = vmatpush1.msra.mxu0 0.0
    %337 = vmatprep.subr.mxu0 0.0
    %338 = vmatpush1.msra.mxu0 0.0
    %339 = vmatprep.mubr.f32.mxu0 0.0
    %340 = vmatmul.mubr.f32.gmra.mrb[0].mxu0 %v273
    %v341 = vpop.f32.mrb[0].mxu0
    %v342 = vadd.f32 %v269, %v341
    %v343 = vpop.f32.mrb[0].mxu0
    %344 = vdwg.mxu0
    %v345 = vxor.u32 %v342, 2147483648
    %v346 = vmul.f32 %v345, 1.442695
    %v347 = vpow.pop %v346
    %v348 = vadd.f32 %v347, 1.0
    %v349 = vrcp.pop %v348
    %v350 = vmul.f32 1.0, %v349
    %v351 = vsel %vm51, %v350, 0.0
    %v352 = vrot.slane %v351, 4
    %v353 = vadd.f32 %v351, %v352
    %v354 = vrot.slane %v353, 2
    %v355 = vadd.f32 %v353, %v354
    %v356 = vrot.slane %v355, 1
    %v357 = vadd.f32 %v355, %v356
    %v358 = vmul.f32 %v357, %v138
    %v359 = vsub.f32 %v350, %v358
    %v360 = vmul.f32 %v359, %v359
    %v361 = vsel %vm51, %v360, 0.0
    %v362 = vrot.slane %v361, 4
    %v363 = vadd.f32 %v361, %v362
    %v364 = vrot.slane %v363, 2
    %v365 = vadd.f32 %v363, %v364
    %v366 = vrot.slane %v365, 1
    %v367 = vadd.f32 %v365, %v366
    %v368 = vmul.f32 %v367, %v138
    %v369 = vadd.f32 %v368, 1e-05
    %v370 = vrsqrt.pop %v369
    %v371 = vmul.f32 %v359, %v370
    %v372 = vld [vmem:[%s8] sm:$0xff]
    %v373 = vld [vmem:[%s8 + $0x8] sm:$0xff]
    %v374 = vld [vmem:[%s8 + $0x10] sm:$0xff]
    %v375 = vld [vmem:[%s8 + $0x18] sm:$0xff]
    %v376 = vld [vmem:[%s9] sm:$0x1]
    %v377 = vsel %vm51, %v371, 0.0
    %v378 = vrot.slane %v377, 4
    %v379 = vadd.f32 %v377, %v378
    %v380 = vrot.slane %v379, 2
    %v381 = vadd.f32 %v379, %v380
    %v382 = vrot.slane %v381, 1
    %v383 = vadd.f32 %v381, %v382
    %v384 = vmul.f32 %v383, %v138
    %v385 = vsub.f32 %v371, %v384
    %v386 = vmul.f32 %v385, %v385
    %v387 = vsel %vm51, %v386, 0.0
    %v388 = vrot.slane %v387, 4
    %v389 = vadd.f32 %v387, %v388
    %v390 = vrot.slane %v389, 2
    %v391 = vadd.f32 %v389, %v390
    %v392 = vrot.slane %v391, 1
    %v393 = vadd.f32 %v391, %v392
    %v394 = vmul.f32 %v393, %v138
    %v395 = vadd.f32 %v394, 1e-05
    %v396 = vrsqrt.pop %v395
    %v397 = vmul.f32 %v385, %v396
    %v399 = vlaneseq
    %v400 = vshrl.u32 %v399, 7
    %v401 = vsub.s32 0, %v400
    %v402 = vrot.slane %v376, %v401
    %v405 = vsel %vm51, %v397, 0
    %407 = vmatprep.subr.mxu0 0.0
    %408 = vmatpush1.msra.mxu0 %v372
    %409 = vmatprep.subr.mxu0 0.0
    %410 = vmatpush1.msra.mxu0 %v373
    %411 = vmatprep.subr.mxu0 0.0
    %412 = vmatpush1.msra.mxu0 %v374
    %413 = vmatprep.subr.mxu0 0.0
    %414 = vmatpush1.msra.mxu0 %v375
    %415 = vmatprep.subr.mxu0 0.0
    %416 = vmatpush1.msra.mxu0 0.0
    %417 = vmatprep.subr.mxu0 0.0
    %418 = vmatpush1.msra.mxu0 0.0
    %419 = vmatprep.subr.mxu0 0.0
    %420 = vmatpush1.msra.mxu0 0.0
    %421 = vmatprep.subr.mxu0 0.0
    %422 = vmatpush1.msra.mxu0 0.0
    %423 = vmatprep.subr.mxu0 0.0
    %424 = vmatpush1.msra.mxu0 0.0
    %425 = vmatprep.subr.mxu0 0.0
    %426 = vmatpush1.msra.mxu0 0.0
    %427 = vmatprep.subr.mxu0 0.0
    %428 = vmatpush1.msra.mxu0 0.0
    %429 = vmatprep.subr.mxu0 0.0
    %430 = vmatpush1.msra.mxu0 0.0
    %431 = vmatprep.subr.mxu0 0.0
    %432 = vmatpush1.msra.mxu0 0.0
    %433 = vmatprep.subr.mxu0 0.0
    %434 = vmatpush1.msra.mxu0 0.0
    %435 = vmatprep.subr.mxu0 0.0
    %436 = vmatpush1.msra.mxu0 0.0
    %437 = vmatprep.subr.mxu0 0.0
    %438 = vmatpush1.msra.mxu0 0.0
    %439 = vmatprep.subr.mxu0 0.0
    %440 = vmatpush1.msra.mxu0 0.0
    %441 = vmatprep.subr.mxu0 0.0
    %442 = vmatpush1.msra.mxu0 0.0
    %443 = vmatprep.subr.mxu0 0.0
    %444 = vmatpush1.msra.mxu0 0.0
    %445 = vmatprep.subr.mxu0 0.0
    %446 = vmatpush1.msra.mxu0 0.0
    %447 = vmatprep.subr.mxu0 0.0
    %448 = vmatpush1.msra.mxu0 0.0
    %449 = vmatprep.subr.mxu0 0.0
    %450 = vmatpush1.msra.mxu0 0.0
    %451 = vmatprep.subr.mxu0 0.0
    %452 = vmatpush1.msra.mxu0 0.0
    %453 = vmatprep.subr.mxu0 0.0
    %454 = vmatpush1.msra.mxu0 0.0
    %455 = vmatprep.subr.mxu0 0.0
    %456 = vmatpush1.msra.mxu0 0.0
    %457 = vmatprep.subr.mxu0 0.0
    %458 = vmatpush1.msra.mxu0 0.0
    %459 = vmatprep.subr.mxu0 0.0
    %460 = vmatpush1.msra.mxu0 0.0
    %461 = vmatprep.subr.mxu0 0.0
    %462 = vmatpush1.msra.mxu0 0.0
    %463 = vmatprep.subr.mxu0 0.0
    %464 = vmatpush1.msra.mxu0 0.0
    %465 = vmatprep.subr.mxu0 0.0
    %466 = vmatpush1.msra.mxu0 0.0
    %467 = vmatprep.subr.mxu0 0.0
    %468 = vmatpush1.msra.mxu0 0.0
    %469 = vmatprep.subr.mxu0 0.0
    %470 = vmatpush1.msra.mxu0 0.0
    %471 = vmatprep.mubr.f32.mxu0 0.0
    %472 = vmatmul.mubr.f32.gmra.mrb[0].mxu0 %v405
    %v473 = vpop.f32.mrb[0].mxu0
    %v474 = vadd.f32 %v402, %v473
    %v475 = vpop.f32.mrb[0].mxu0
    %476 = vdwg.mxu0
    %477 = vst.msk [vmem:[#allocation4] sm:$0xff] %vm258, %v474
    // Predicated region
    $region42: #{deep_cca_forward.1} parent=1 // pred_check
      _
    $region43: #{deep_cca_forward.1} parent=1 // pred_check_branch
      %479 = sbr.rel (0) target = $region45
    $region44: #{deep_cca_forward.1} parent=1 // pred_region
      %s481 = ssub.s32 128, 128
      %482 = vsyncadd [#allocation3], %s481
      %s484 = sshll.u32 [#allocation2], 4
      %s485 = int_to_ptr.vmem [resolvable:$true] %s484
      %487 = dma.vmem_to_hbm [thread:$0]  %s485, 128, %s10, [#allocation3]
    $region45: #{deep_cca_forward.1} parent=1 // pred_fallthru
      _
    // Predicated region
    $region46: #{deep_cca_forward.1} parent=1 // pred_check
      _
    $region47: #{deep_cca_forward.1} parent=1 // pred_check_branch
      %489 = sbr.rel (0) target = $region49
    $region48: #{deep_cca_forward.1} parent=1 // pred_region
      %s491 = ssub.s32 128, 128
      %492 = vsyncadd [#allocation5], %s491
      %s494 = sshll.u32 [#allocation4], 4
      %s495 = int_to_ptr.vmem [resolvable:$true] %s494
      %497 = dma.vmem_to_hbm [thread:$0]  %s495, 128, %s11, [#allocation5]
    $region49: #{deep_cca_forward.1} parent=1 // pred_fallthru
      _
    // Predicated region
    $region50: #{deep_cca_forward.1} parent=1 // pred_check
      _
    $region51: #{deep_cca_forward.1} parent=1 // pred_check_branch
      %499 = sbr.rel (0) target = $region53
    $region52: #{deep_cca_forward.1} parent=1 // pred_region
      %500 = dma.done [#allocation3], 128
    $region53: #{deep_cca_forward.1} parent=1 // pred_fallthru
      _
    // Predicated region
    $region54: #{deep_cca_forward.1} parent=1 // pred_check
      _
    $region55: #{deep_cca_forward.1} parent=1 // pred_check_branch
      %502 = sbr.rel (0) target = $region57
    $region56: #{deep_cca_forward.1} parent=1 // pred_region
      %503 = dma.done [#allocation5], 128
    $region57: #{deep_cca_forward.1} parent=1 // pred_fallthru
      _
    %504 = vsyncpa [#allocation3], 1
    %505 = vsyncpa [#allocation5], 1

</llo_original>
